<compile_context>
chip_gen: v6e
topology: v6e:2x2x1
jax: 0.10.0
libtpu: 0.0.40
codegen_flags: <defaults>
</compile_context>

<pallas_src>
import functools

import jax
import jax.numpy as jnp
from jax.experimental import pallas as pl
from jax.experimental.pallas import tpu as pltpu

# Logical model dims.
K_IN = 400          # 100 * 2 * 2
H_HID = 64
N_OUT = 3

# Padded dims (weights only; x keeps its natural 400-wide last dim).
H_PAD = 128         # hidden 64 -> 128 (lane-dense for the MXU)
N_PAD = 8           # output 3 -> 8 (small, full-extent last dim; minimizes HBM write)

MAX_TILE_B = 4096   # batch rows per grid step (f32 x tile = 6.4 MiB; x2 buffers ~13 MiB)


def _round_up(x: int, m: int) -> int:
    return (x + m - 1) // m * m


def simple_nn_kernel(x_ref, w1_ref, b1_ref, w2_ref, b2_ref, o_ref):
    # x streamed as f32; cast to bf16 on the VPU (hidden under the x DMA).
    x = x_ref[...].astype(jnp.bfloat16)                          # (TB, 400)
    # fc1: (TB, 400)bf16 @ (400, 128)bf16 -> f32 accum on the MXU
    h = jnp.dot(x, w1_ref[...], preferred_element_type=jnp.float32)
    h = jnp.maximum(h + b1_ref[...], 0.0)                        # bias + ReLU in f32
    # fc2: (TB, 128)bf16 @ (128, 8)bf16 -> f32 accum
    out = jnp.dot(h.astype(jnp.bfloat16), w2_ref[...],
                  preferred_element_type=jnp.float32)
    o_ref[...] = out + b2_ref[...]                               # (TB, 8) f32


def prepare_params(w1, b1, w2, b2):
    """One-time: transpose to (in, out), zero-pad, cast weights to bf16.

    PyTorch nn.Linear convention: w1 (64, 400), b1 (64,), w2 (3, 64), b2 (3,).
    Zero padding of hidden/output columns and biases is exact (padded contributions = 0).
    """
    w1t = jnp.zeros((K_IN, H_PAD), jnp.float32).at[:, :H_HID].set(w1.T)
    w2t = jnp.zeros((H_PAD, N_PAD), jnp.float32).at[:H_HID, :N_OUT].set(w2.T)
    b1p = jnp.zeros((1, H_PAD), jnp.float32).at[0, :H_HID].set(b1)
    b2p = jnp.zeros((1, N_PAD), jnp.float32).at[0, :N_OUT].set(b2)
    return w1t.astype(jnp.bfloat16), b1p, w2t.astype(jnp.bfloat16), b2p


@functools.partial(jax.jit, static_argnames=())
def simple_nn_forward(x_nchw, w1t, b1p, w2t, b2p):
    """x_nchw: (B, 100, 2, 2) float32.  w1t/b1p/w2t/b2p from prepare_params()."""
    B = x_nchw.shape[0]

    # Flatten (matches torch.nn.Flatten on contiguous NCHW) — a free reshape/view.
    x2d = x_nchw.reshape(B, -1)                                   # (B, 400) f32

    # Batch tile: big enough to amortize per-step overhead, but keep >=2 grid steps
    # when B allows it so v7x's 2 TensorCores both get work. Multiple of 16 for
    # clean sublane packing once cast to bf16 in-kernel.
    tile_b = min(MAX_TILE_B, _round_up(pl.cdiv(B, 2), 16))
    grid = (pl.cdiv(B, tile_b),)                                  # partial last block OK

    flops = 2 * B * (K_IN * H_PAD + H_PAD * N_PAD)
    bytes_accessed = (B * K_IN * 4                                # x (f32 in)
                      + (K_IN * H_PAD + H_PAD * N_PAD) * 2        # weights (bf16)
                      + (H_PAD + N_PAD) * 4                       # biases (f32)
                      + B * N_PAD * 4)                            # output (f32)

    out_pad = pl.pallas_call(
        simple_nn_kernel,
        out_shape=jax.ShapeDtypeStruct((B, N_PAD), jnp.float32),
        grid=grid,
        in_specs=[
            pl.BlockSpec((tile_b, K_IN), lambda i: (i, 0)),       # x: streamed per batch tile
            pl.BlockSpec((K_IN, H_PAD), lambda i: (0, 0)),        # w1: resident
            pl.BlockSpec((1, H_PAD), lambda i: (0, 0)),           # b1: resident
            pl.BlockSpec((H_PAD, N_PAD), lambda i: (0, 0)),       # w2: resident
            pl.BlockSpec((1, N_PAD), lambda i: (0, 0)),           # b2: resident
        ],
        out_specs=pl.BlockSpec((tile_b, N_PAD), lambda i: (i, 0)),
        compiler_params=pltpu.CompilerParams(
            dimension_semantics=("parallel",),                    # v7x: shard batch over 2 TCs
            vmem_limit_bytes=32 * 1024 * 1024,                    # ample on v5e/v6e/v7x
        ),
        cost_estimate=pl.CostEstimate(
            flops=flops, transcendentals=0, bytes_accessed=bytes_accessed),
    )(x2d, w1t, b1p, w2t, b2p)

    # Strip the small lane padding (8 -> 3).
    return out_pad[:, :N_OUT]


def _reference(x, w1, b1, w2, b2):
    x2d = x.reshape(x.shape[0], -1)
    return jnp.maximum(x2d @ w1.T + b1, 0.0) @ w2.T + b2


if __name__ == "__main__":
    key = jax.random.PRNGKey(0)
    k_x, k_w1, k_b1, k_w2, k_b2, k_x2 = jax.random.split(key, 6)

    # Deterministic synthetic parameters (PyTorch Linear shapes: (out, in)).
    w1 = jax.random.normal(k_w1, (64, 400), dtype=jnp.float32) * 0.05
    b1 = jax.random.normal(k_b1, (64,), dtype=jnp.float32) * 0.05
    w2 = jax.random.normal(k_w2, (3, 64), dtype=jnp.float32) * 0.05
    b2 = jax.random.normal(k_b2, (3,), dtype=jnp.float32) * 0.05
    params = prepare_params(w1, b1, w2, b2)     # one-time pad/transpose/cast

    # Small batch (B=2): input implied by fc1 is 100 channels * 2 * 2 spatial.
    B = 2
    x = jax.random.normal(k_x, (B, 100, 2, 2), dtype=jnp.float32)
    out = jax.block_until_ready(simple_nn_forward(x, *params))
    ref = _reference(x, w1, b1, w2, b2)
    assert out.shape == (B, 3)
    # bf16 matmul inputs with fp32 accumulation: loosen tolerance vs fp32 reference.
    assert jnp.allclose(out, ref, atol=3e-2, rtol=3e-2), (out, ref)

    # Second check: B not a multiple of tile_b (exercises the partial last block).
    B2 = 37
    x2 = jax.random.normal(k_x2, (B2, 100, 2, 2), dtype=jnp.float32)
    out2 = jax.block_until_ready(simple_nn_forward(x2, *params))
    ref2 = _reference(x2, w1, b1, w2, b2)
    assert out2.shape == (B2, 3)
    assert jnp.allclose(out2, ref2, atol=3e-2, rtol=3e-2), (out2, ref2)

    print("KERNEL_OK")
</pallas_src>

<mosaic_0001>
module attributes {stable_mosaic.version = 11 : i64} {
  func.func @simple_nn_kernel(%arg0: i32, %arg1: memref<16x400xf32, #tpu.memory_space<vmem>>, %arg2: memref<400x128xbf16, #tpu.memory_space<vmem>>, %arg3: memref<1x128xf32, #tpu.memory_space<vmem>>, %arg4: memref<128x8xbf16, #tpu.memory_space<vmem>>, %arg5: memref<1x8xf32, #tpu.memory_space<vmem>>, %arg6: memref<16x8xf32, #tpu.memory_space<vmem>>) attributes {dimension_semantics = [#tpu.dimension_semantics<parallel>], iteration_bounds = array<i64: 1>, scalar_prefetch = 0 : i64, scratch_operands = 0 : i64, tpu.core_type = #tpu.core_type<tc>, window_params = [{transform_indices = @transform_0, window_bounds = array<i64: 16, 400>}, {pipeline_mode = #tpu.pipeline_mode<synchronous>, transform_indices = @transform_1, window_bounds = array<i64: 400, 128>}, {pipeline_mode = #tpu.pipeline_mode<synchronous>, transform_indices = @transform_2, window_bounds = array<i64: 1, 128>}, {pipeline_mode = #tpu.pipeline_mode<synchronous>, transform_indices = @transform_3, window_bounds = array<i64: 128, 8>}, {pipeline_mode = #tpu.pipeline_mode<synchronous>, transform_indices = @transform_4, window_bounds = array<i64: 1, 8>}, {transform_indices = @transform_5, window_bounds = array<i64: 16, 8>}]} {
    %c0 = arith.constant 0 : index
    %c0_0 = arith.constant 0 : index
    %0 = vector.load %arg1[%c0, %c0_0] : memref<16x400xf32, #tpu.memory_space<vmem>>, vector<16x400xf32>
    %1 = arith.truncf %0 : vector<16x400xf32> to vector<16x400xbf16>
    %c0_1 = arith.constant 0 : index
    %c0_2 = arith.constant 0 : index
    %2 = vector.load %arg2[%c0_1, %c0_2] : memref<400x128xbf16, #tpu.memory_space<vmem>>, vector<400x128xbf16>
    %cst = arith.constant dense<0.000000e+00> : vector<16x128xf32>
    %3 = tpu.matmul %1, %2, %cst {dimension_numbers = #tpu.dot_dimension_numbers<[1], [0], [0], [1], [0, 0, 1, 1], [], []>} : vector<16x400xbf16>, vector<400x128xbf16>, vector<16x128xf32> -> vector<16x128xf32>
    %c0_3 = arith.constant 0 : index
    %c0_4 = arith.constant 0 : index
    %4 = vector.load %arg3[%c0_3, %c0_4] : memref<1x128xf32, #tpu.memory_space<vmem>>, vector<1x128xf32>
    %5 = vector.broadcast %4 : vector<1x128xf32> to vector<16x128xf32>
    %6 = arith.addf %3, %5 : vector<16x128xf32>
    %cst_5 = arith.constant 0.000000e+00 : f32
    %7 = vector.broadcast %cst_5 : f32 to vector<16x128xf32>
    %8 = arith.maximumf %6, %7 : vector<16x128xf32>
    %9 = arith.truncf %8 : vector<16x128xf32> to vector<16x128xbf16>
    %c0_6 = arith.constant 0 : index
    %c0_7 = arith.constant 0 : index
    %10 = vector.load %arg4[%c0_6, %c0_7] : memref<128x8xbf16, #tpu.memory_space<vmem>>, vector<128x8xbf16>
    %cst_8 = arith.constant dense<0.000000e+00> : vector<16x8xf32>
    %11 = tpu.matmul %9, %10, %cst_8 {dimension_numbers = #tpu.dot_dimension_numbers<[1], [0], [0], [1], [0, 0, 1, 1], [], []>} : vector<16x128xbf16>, vector<128x8xbf16>, vector<16x8xf32> -> vector<16x8xf32>
    %c0_9 = arith.constant 0 : index
    %c0_10 = arith.constant 0 : index
    %12 = vector.load %arg5[%c0_9, %c0_10] : memref<1x8xf32, #tpu.memory_space<vmem>>, vector<1x8xf32>
    %13 = vector.broadcast %12 : vector<1x8xf32> to vector<16x8xf32>
    %14 = arith.addf %11, %13 : vector<16x8xf32>
    %c0_11 = arith.constant 0 : index
    %c0_12 = arith.constant 0 : index
    %15 = vector.load %arg6[%c0_11, %c0_12] : memref<16x8xf32, #tpu.memory_space<vmem>>, vector<16x8xf32>
    tpu.vector_store %arg6[%c0_11, %c0_12], %14 {strides = array<i32>} : memref<16x8xf32, #tpu.memory_space<vmem>>, vector<16x8xf32>,
    return
  }
  func.func @transform_0(%arg0: i32) -> (i32, i32) {
    %c0_i32 = arith.constant 0 : i32
    %c0_i32_0 = arith.constant 0 : i32
    return %arg0, %c0_i32 : i32, i32
  }
  func.func @transform_1(%arg0: i32) -> (i32, i32) {
    %c0_i32 = arith.constant 0 : i32
    %c0_i32_0 = arith.constant 0 : i32
    %c0_i32_1 = arith.constant 0 : i32
    return %c0_i32, %c0_i32_0 : i32, i32
  }
  func.func @transform_2(%arg0: i32) -> (i32, i32) {
    %c0_i32 = arith.constant 0 : i32
    %c0_i32_0 = arith.constant 0 : i32
    %c0_i32_1 = arith.constant 0 : i32
    return %c0_i32, %c0_i32_0 : i32, i32
  }
  func.func @transform_3(%arg0: i32) -> (i32, i32) {
    %c0_i32 = arith.constant 0 : i32
    %c0_i32_0 = arith.constant 0 : i32
    %c0_i32_1 = arith.constant 0 : i32
    return %c0_i32, %c0_i32_0 : i32, i32
  }
  func.func @transform_4(%arg0: i32) -> (i32, i32) {
    %c0_i32 = arith.constant 0 : i32
    %c0_i32_0 = arith.constant 0 : i32
    %c0_i32_1 = arith.constant 0 : i32
    return %c0_i32, %c0_i32_0 : i32, i32
  }
  func.func @transform_5(%arg0: i32) -> (i32, i32) {
    %c0_i32 = arith.constant 0 : i32
    %c0_i32_0 = arith.constant 0 : i32
    return %arg0, %c0_i32 : i32, i32
  }
}

</mosaic_0001>

<llo_original>
// kernel: simple_nn_forward.1
$region0: #{simple_nn_forward.1}
  #allocation0 [shape = 'u32[]', space=smem, size = 0x4, offset = 0x4, fixed_abs, tag = 'smem constant byte address 0x4 - core index']
  #allocation1 [shape = 'u32[144,128]{1,0:T(1,128)}', space=vmem, size = 0x12000, scoped, tag = 'internal scratch']
  %s0 = inlined_call_operand.vmem [shape: f32[2,400], index: 0, kind: input, shape index: {}]
  %s1 = inlined_call_operand.vmem [shape: bf16[400,128], index: 1, kind: input, shape index: {}]
  %s2 = inlined_call_operand.vmem [shape: f32[1,128], index: 2, kind: input, shape index: {}]
  %s3 = inlined_call_operand.vmem [shape: bf16[128,8], index: 3, kind: input, shape index: {}]
  %s4 = inlined_call_operand.vmem [shape: f32[1,8], index: 4, kind: input, shape index: {}]
  %s5 = inlined_call_operand.hbm [shape: f32[2,8], index: 5, kind: output, shape index: {}]
  %s6 = sld [smem:[#allocation0]]
  $region30: #{simple_nn_forward.1} parent=0
    _
  %s8 = ssub.s32 1, %s6
  %s9 = scalar_select 0, %s8, %s6
  $region1: #{simple_nn_forward.1} parent=0
    #allocation2 [shape = 'u8[8192]{0}', space=vmem, size = 0x2000, scoped, tag = 'output window, operand 0, single buffered']
    #allocation3 [shape = 's32[1]{0}', space=sflag, size = 0x4, scoped, tag = 'scoped memory for simple_nn_forward.1']
    %10 = vsyncpa [#allocation3], 0
    // Predicated region
    $region2: #{simple_nn_forward.1} parent=1 // pred_check
      _
    $region3: #{simple_nn_forward.1} parent=1 // pred_check_branch
      %12 = sbr.rel (0) target = $region5
    $region4: #{simple_nn_forward.1} parent=1 // pred_region
      _
    $region5: #{simple_nn_forward.1} parent=1 // pred_fallthru
      _
    // Predicated region
    $region6: #{simple_nn_forward.1} parent=1 // pred_check
      _
    $region7: #{simple_nn_forward.1} parent=1 // pred_check_branch
      %14 = sbr.rel (0) target = $region9
    $region8: #{simple_nn_forward.1} parent=1 // pred_region
      _
    $region9: #{simple_nn_forward.1} parent=1 // pred_fallthru
      _
    // Predicated region
    $region10: #{simple_nn_forward.1} parent=1 // pred_check
      _
    $region11: #{simple_nn_forward.1} parent=1 // pred_check_branch
      %16 = sbr.rel (0) target = $region13
    $region12: #{simple_nn_forward.1} parent=1 // pred_region
      _
    $region13: #{simple_nn_forward.1} parent=1 // pred_fallthru
      _
    // Predicated region
    $region14: #{simple_nn_forward.1} parent=1 // pred_check
      _
    $region15: #{simple_nn_forward.1} parent=1 // pred_check_branch
      %18 = sbr.rel (0) target = $region17
    $region16: #{simple_nn_forward.1} parent=1 // pred_region
      _
    $region17: #{simple_nn_forward.1} parent=1 // pred_fallthru
      _
    // Predicated region
    $region18: #{simple_nn_forward.1} parent=1 // pred_check
      _
    $region19: #{simple_nn_forward.1} parent=1 // pred_check_branch
      %20 = sbr.rel (0) target = $region21
    $region20: #{simple_nn_forward.1} parent=1 // pred_region
      _
    $region21: #{simple_nn_forward.1} parent=1 // pred_fallthru
      _
    %v22 = vld [vmem:[%s0] sm:$0xff]
    %v23 = vld [vmem:[%s0 + $0x8] sm:$0xff]
    %v24 = vld [vmem:[%s0 + $0x10] sm:$0xff]
    %v25 = vld [vmem:[%s0 + $0x18] sm:$0xff]
    %v26 = vld [vmem:[%s0 + $0x20] sm:$0xff]
    %v27 = vld [vmem:[%s0 + $0x28] sm:$0xff]
    %v28 = vld [vmem:[%s0 + $0x30] sm:$0xff]
    %v29 = vld [vmem:[%s0 + $0x38] sm:$0xff]
    %v38 = vcombine.low %v22, %v23
    %v39 = vcombine.high %v22, %v23
    %v40 = vcombine.low %v24, %v25
    %v41 = vcombine.high %v24, %v25
    %v43 = vunpack.c.l.s4 1983009808
    %v44 = vunpack.c.0.s8 %v43
    %v45 = vlaneseq
    %v46 = vshrl.u32 %v45, 7
    %v47 = vsub.s32 %v44, %v46
    %v48 = vrot.slane %v38, %v47
    %v50 = vunpack.c.l.s4 1983009808
    %v51 = vunpack.c.0.s8 %v50
    %v52 = vlaneseq
    %v53 = vshrl.u32 %v52, 7
    %v54 = vsub.s32 %v51, %v53
    %v55 = vrot.slane %v39, %v54
    %v57 = vunpack.c.l.s4 1983009808
    %v58 = vunpack.c.0.s8 %v57
    %v59 = vlaneseq
    %v60 = vshrl.u32 %v59, 7
    %v61 = vsub.s32 %v58, %v60
    %v62 = vrot.slane %v40, %v61
    %v64 = vunpack.c.l.s4 1983009808
    %v65 = vunpack.c.0.s8 %v64
    %v66 = vlaneseq
    %v67 = vshrl.u32 %v66, 7
    %v68 = vsub.s32 %v65, %v67
    %v69 = vrot.slane %v41, %v68
    %v70 = vcombine.low %v48, %v62
    %v71 = vcombine.high %v48, %v62
    %v72 = vcombine.low %v55, %v69
    %v73 = vcombine.high %v55, %v69
    %v74 = vcombine.low %v26, %v27
    %v75 = vcombine.high %v26, %v27
    %v76 = vcombine.low %v28, %v29
    %v77 = vcombine.high %v28, %v29
    %v79 = vunpack.c.l.s4 1983009808
    %v80 = vunpack.c.0.s8 %v79
    %v81 = vlaneseq
    %v82 = vshrl.u32 %v81, 7
    %v83 = vsub.s32 %v80, %v82
    %v84 = vrot.slane %v74, %v83
    %v86 = vunpack.c.l.s4 1983009808
    %v87 = vunpack.c.0.s8 %v86
    %v88 = vlaneseq
    %v89 = vshrl.u32 %v88, 7
    %v90 = vsub.s32 %v87, %v89
    %v91 = vrot.slane %v75, %v90
    %v93 = vunpack.c.l.s4 1983009808
    %v94 = vunpack.c.0.s8 %v93
    %v95 = vlaneseq
    %v96 = vshrl.u32 %v95, 7
    %v97 = vsub.s32 %v94, %v96
    %v98 = vrot.slane %v76, %v97
    %v100 = vunpack.c.l.s4 1983009808
    %v101 = vunpack.c.0.s8 %v100
    %v102 = vlaneseq
    %v103 = vshrl.u32 %v102, 7
    %v104 = vsub.s32 %v101, %v103
    %v105 = vrot.slane %v77, %v104
    %v106 = vcombine.low %v84, %v98
    %v107 = vcombine.high %v84, %v98
    %v108 = vcombine.low %v91, %v105
    %v109 = vcombine.high %v91, %v105
    %v118 = vpack.c.bf16 %v106, %v70
    %v119 = vpack.c.bf16 %v107, %v71
    %v120 = vpack.c.bf16 %v108, %v72
    %v121 = vpack.c.bf16 %v109, %v73
    %v122 = vld [vmem:[%s1] sm:$0xf]
    %v123 = vld [vmem:[%s1 + $0x4] sm:$0xf]
    %v124 = vld [vmem:[%s1 + $0x8] sm:$0xf]
    %v125 = vld [vmem:[%s1 + $0xc] sm:$0xf]
    %v126 = vld [vmem:[%s1 + $0x10] sm:$0xf]
    %v127 = vld [vmem:[%s1 + $0x14] sm:$0xf]
    %v128 = vld [vmem:[%s1 + $0x18] sm:$0xf]
    %v129 = vld [vmem:[%s1 + $0x1c] sm:$0xf]
    %v130 = vld [vmem:[%s1 + $0x20] sm:$0xf]
    %v131 = vld [vmem:[%s1 + $0x24] sm:$0xf]
    %v132 = vld [vmem:[%s1 + $0x28] sm:$0xf]
    %v133 = vld [vmem:[%s1 + $0x2c] sm:$0xf]
    %v134 = vld [vmem:[%s1 + $0x30] sm:$0xf]
    %v135 = vld [vmem:[%s1 + $0x34] sm:$0xf]
    %v136 = vld [vmem:[%s1 + $0x38] sm:$0xf]
    %v137 = vld [vmem:[%s1 + $0x3c] sm:$0xf]
    %v138 = vld [vmem:[%s1 + $0x40] sm:$0xf]
    %v139 = vld [vmem:[%s1 + $0x44] sm:$0xf]
    %v140 = vld [vmem:[%s1 + $0x48] sm:$0xf]
    %v141 = vld [vmem:[%s1 + $0x4c] sm:$0xf]
    %v142 = vld [vmem:[%s1 + $0x50] sm:$0xf]
    %v143 = vld [vmem:[%s1 + $0x54] sm:$0xf]
    %v144 = vld [vmem:[%s1 + $0x58] sm:$0xf]
    %v145 = vld [vmem:[%s1 + $0x5c] sm:$0xf]
    %v146 = vld [vmem:[%s1 + $0x60] sm:$0xf]
    %v147 = vld [vmem:[%s1 + $0x64] sm:$0xf]
    %v148 = vld [vmem:[%s1 + $0x68] sm:$0xf]
    %v149 = vld [vmem:[%s1 + $0x6c] sm:$0xf]
    %v150 = vld [vmem:[%s1 + $0x70] sm:$0xf]
    %v151 = vld [vmem:[%s1 + $0x74] sm:$0xf]
    %v152 = vld [vmem:[%s1 + $0x78] sm:$0xf]
    %v153 = vld [vmem:[%s1 + $0x7c] sm:$0xf]
    %v154 = vld [vmem:[%s1 + $0x80] sm:$0xf]
    %v155 = vld [vmem:[%s1 + $0x84] sm:$0xf]
    %v156 = vld [vmem:[%s1 + $0x88] sm:$0xf]
    %v157 = vld [vmem:[%s1 + $0x8c] sm:$0xf]
    %v158 = vld [vmem:[%s1 + $0x90] sm:$0xf]
    %v159 = vld [vmem:[%s1 + $0x94] sm:$0xf]
    %v160 = vld [vmem:[%s1 + $0x98] sm:$0xf]
    %v161 = vld [vmem:[%s1 + $0x9c] sm:$0xf]
    %v162 = vld [vmem:[%s1 + $0xa0] sm:$0xf]
    %v163 = vld [vmem:[%s1 + $0xa4] sm:$0xf]
    %v164 = vld [vmem:[%s1 + $0xa8] sm:$0xf]
    %v165 = vld [vmem:[%s1 + $0xac] sm:$0xf]
    %v166 = vld [vmem:[%s1 + $0xb0] sm:$0xf]
    %v167 = vld [vmem:[%s1 + $0xb4] sm:$0xf]
    %v168 = vld [vmem:[%s1 + $0xb8] sm:$0xf]
    %v169 = vld [vmem:[%s1 + $0xbc] sm:$0xf]
    %v170 = vld [vmem:[%s1 + $0xc0] sm:$0xf]
    %v171 = vld [vmem:[%s1 + $0xc4] sm:$0xf]
    %v172 = vld [vmem:[%s2] sm:$0x1]
    %v174 = vlaneseq
    %v175 = vshrl.u32 %v174, 7
    %v176 = vsub.s32 0, %v175
    %v177 = vrot.slane %v172, %v176
    %v229 = vunpack.c.l.b16 %v122
    %v230 = vunpack.c.l.b16 %v123
    %v231 = vunpack.c.l.b16 %v124
    %v232 = vunpack.c.l.b16 %v125
    %v233 = vunpack.c.l.b16 %v126
    %v234 = vunpack.c.l.b16 %v127
    %v235 = vunpack.c.l.b16 %v128
    %v236 = vunpack.c.l.b16 %v129
    %v237 = vunpack.c.l.b16 %v130
    %v238 = vunpack.c.l.b16 %v131
    %v239 = vunpack.c.l.b16 %v132
    %v240 = vunpack.c.l.b16 %v133
    %v241 = vunpack.c.l.b16 %v134
    %v242 = vunpack.c.l.b16 %v135
    %v243 = vunpack.c.l.b16 %v136
    %v244 = vunpack.c.l.b16 %v137
    %v245 = vunpack.c.l.b16 %v138
    %v246 = vunpack.c.l.b16 %v139
    %v247 = vunpack.c.l.b16 %v140
    %v248 = vunpack.c.l.b16 %v141
    %v249 = vunpack.c.l.b16 %v142
    %v250 = vunpack.c.l.b16 %v143
    %v251 = vunpack.c.l.b16 %v144
    %v252 = vunpack.c.l.b16 %v145
    %v253 = vunpack.c.l.b16 %v146
    %v254 = vunpack.c.l.b16 %v147
    %v255 = vunpack.c.l.b16 %v148
    %v256 = vunpack.c.l.b16 %v149
    %v257 = vunpack.c.l.b16 %v150
    %v258 = vunpack.c.l.b16 %v151
    %v259 = vunpack.c.l.b16 %v152
    %v260 = vunpack.c.l.b16 %v153
    %v261 = vunpack.c.l.b16 %v154
    %v262 = vunpack.c.l.b16 %v155
    %v263 = vunpack.c.l.b16 %v156
    %v264 = vunpack.c.l.b16 %v157
    %v265 = vunpack.c.l.b16 %v158
    %v266 = vunpack.c.l.b16 %v159
    %v267 = vunpack.c.l.b16 %v160
    %v268 = vunpack.c.l.b16 %v161
    %v269 = vunpack.c.l.b16 %v162
    %v270 = vunpack.c.l.b16 %v163
    %v271 = vunpack.c.l.b16 %v164
    %v272 = vunpack.c.l.b16 %v165
    %v273 = vunpack.c.l.b16 %v166
    %v274 = vunpack.c.l.b16 %v167
    %v275 = vunpack.c.l.b16 %v168
    %v276 = vunpack.c.l.b16 %v169
    %v277 = vunpack.c.l.b16 %v170
    %v278 = vunpack.c.l.b16 %v171
    %v279 = vpack.c.b16 %v230, %v229
    %v280 = vpack.c.b16 %v232, %v231
    %v281 = vpack.c.b16 %v234, %v233
    %v282 = vpack.c.b16 %v236, %v235
    %v283 = vpack.c.b16 %v238, %v237
    %v284 = vpack.c.b16 %v240, %v239
    %v285 = vpack.c.b16 %v242, %v241
    %v286 = vpack.c.b16 %v244, %v243
    %v287 = vpack.c.b16 %v246, %v245
    %v288 = vpack.c.b16 %v248, %v247
    %v289 = vpack.c.b16 %v250, %v249
    %v290 = vpack.c.b16 %v252, %v251
    %v291 = vpack.c.b16 %v254, %v253
    %v292 = vpack.c.b16 %v256, %v255
    %v293 = vpack.c.b16 %v258, %v257
    %v294 = vpack.c.b16 %v260, %v259
    %v295 = vpack.c.b16 %v262, %v261
    %v296 = vpack.c.b16 %v264, %v263
    %v297 = vpack.c.b16 %v266, %v265
    %v298 = vpack.c.b16 %v268, %v267
    %v299 = vpack.c.b16 %v270, %v269
    %v300 = vpack.c.b16 %v272, %v271
    %v301 = vpack.c.b16 %v274, %v273
    %v302 = vpack.c.b16 %v276, %v275
    %v303 = vpack.c.b16 %v278, %v277
    %vm329 = vcmask 130048
    %v331 = vsel %vm329, %v121, 0
    %333 = vmatprep.subr.bf16.mxu0 0
    %334 = vmatpush1.bf16.msra.mxu0 %v286
    %335 = vmatprep.subr.bf16.mxu0 0
    %336 = vmatpush1.bf16.msra.mxu0 %v285
    %337 = vmatprep.subr.bf16.mxu0 0
    %338 = vmatpush1.bf16.msra.mxu0 %v284
    %339 = vmatprep.subr.bf16.mxu0 0
    %340 = vmatpush1.bf16.msra.mxu0 %v283
    %341 = vmatprep.subr.bf16.mxu0 0
    %342 = vmatpush1.bf16.msra.mxu0 %v282
    %343 = vmatprep.subr.bf16.mxu0 0
    %344 = vmatpush1.bf16.msra.mxu0 %v281
    %345 = vmatprep.subr.bf16.mxu0 0
    %346 = vmatpush1.bf16.msra.mxu0 %v280
    %347 = vmatprep.subr.bf16.mxu0 0
    %348 = vmatpush1.bf16.msra.mxu0 %v279
    %349 = vmatprep.subr.bf16.mxu0 0
    %350 = vmatpush2.bf16.msra.mxu0 %v294
    %351 = vmatprep.subr.bf16.mxu0 0
    %352 = vmatpush2.bf16.msra.mxu0 %v293
    %353 = vmatprep.subr.bf16.mxu0 0
    %354 = vmatpush2.bf16.msra.mxu0 %v292
    %355 = vmatprep.subr.bf16.mxu0 0
    %356 = vmatpush2.bf16.msra.mxu0 %v291
    %357 = vmatprep.subr.bf16.mxu0 0
    %358 = vmatpush2.bf16.msra.mxu0 %v290
    %359 = vmatprep.subr.bf16.mxu0 0
    %360 = vmatpush2.bf16.msra.mxu0 %v289
    %361 = vmatprep.subr.bf16.mxu0 0
    %362 = vmatpush2.bf16.msra.mxu0 %v288
    %363 = vmatprep.subr.bf16.mxu0 0
    %364 = vmatpush2.bf16.msra.mxu0 %v287
    %365 = vmatprep.mubr.bf16.mxu0 %v119
    %366 = vmatmul.mubr.bf16.gmra.mxu0 %v118
    %v367 = vpop.f32.mrf.mxu0
    %v368 = vadd.f32 %v177, %v367
    %v369 = vpop.f32.mrf.mxu0
    %v370 = vpop.f32.mrf.mxu0
    %v371 = vadd.f32 %v177, %v370
    %v372 = vpop.f32.mrf.mxu0
    %373 = vdwg.mxu0
    %374 = vmatprep.subr.bf16.mxu0 0
    %375 = vmatpush1.bf16.msra.mxu0 %v302
    %376 = vmatprep.subr.bf16.mxu0 0
    %377 = vmatpush1.bf16.msra.mxu0 %v301
    %378 = vmatprep.subr.bf16.mxu0 0
    %379 = vmatpush1.bf16.msra.mxu0 %v300
    %380 = vmatprep.subr.bf16.mxu0 0
    %381 = vmatpush1.bf16.msra.mxu0 %v299
    %382 = vmatprep.subr.bf16.mxu0 0
    %383 = vmatpush1.bf16.msra.mxu0 %v298
    %384 = vmatprep.subr.bf16.mxu0 0
    %385 = vmatpush1.bf16.msra.mxu0 %v297
    %386 = vmatprep.subr.bf16.mxu0 0
    %387 = vmatpush1.bf16.msra.mxu0 %v296
    %388 = vmatprep.subr.bf16.mxu0 0
    %389 = vmatpush1.bf16.msra.mxu0 %v295
    %390 = vmatprep.subr.bf16.mxu0 0
    %391 = vmatpush2.bf16.msra.mxu0 0
    %392 = vmatprep.subr.bf16.mxu0 0
    %393 = vmatpush2.bf16.msra.mxu0 0
    %394 = vmatprep.subr.bf16.mxu0 0
    %395 = vmatpush2.bf16.msra.mxu0 0
    %396 = vmatprep.subr.bf16.mxu0 0
    %397 = vmatpush2.bf16.msra.mxu0 0
    %398 = vmatprep.subr.bf16.mxu0 0
    %399 = vmatpush2.bf16.msra.mxu0 0
    %400 = vmatprep.subr.bf16.mxu0 0
    %401 = vmatpush2.bf16.msra.mxu0 0
    %402 = vmatprep.subr.bf16.mxu0 0
    %403 = vmatpush2.bf16.msra.mxu0 0
    %404 = vmatprep.subr.bf16.mxu0 0
    %405 = vmatpush2.bf16.msra.mxu0 %v303
    %406 = vmatprep.mubr.bf16.mxu0 %v331
    %407 = vmatmul.mubr.bf16.gmra.mxu0 %v120
    %v408 = vpop.f32.mrf.mxu0
    %v409 = vadd.f32 %v368, %v408
    %v410 = vpop.f32.mrf.mxu0
    %v411 = vpop.f32.mrf.mxu0
    %v412 = vadd.f32 %v371, %v411
    %v413 = vpop.f32.mrf.mxu0
    %414 = vdwg.mxu0
    %v415 = vmax.f32 %v409, 0.0
    %v416 = vmax.f32 %v412, 0.0
    %v417 = vpack.c.bf16 %v416, %v415
    %v418 = vld [vmem:[%s3] sm:$0xf]
    %v419 = vld [vmem:[%s3 + $0x4] sm:$0xf]
    %v420 = vld [vmem:[%s3 + $0x8] sm:$0xf]
    %v421 = vld [vmem:[%s3 + $0xc] sm:$0xf]
    %v422 = vld [vmem:[%s3 + $0x10] sm:$0xf]
    %v423 = vld [vmem:[%s3 + $0x14] sm:$0xf]
    %v424 = vld [vmem:[%s3 + $0x18] sm:$0xf]
    %v425 = vld [vmem:[%s3 + $0x1c] sm:$0xf]
    %v426 = vld [vmem:[%s3 + $0x20] sm:$0xf]
    %v427 = vld [vmem:[%s3 + $0x24] sm:$0xf]
    %v428 = vld [vmem:[%s3 + $0x28] sm:$0xf]
    %v429 = vld [vmem:[%s3 + $0x2c] sm:$0xf]
    %v430 = vld [vmem:[%s3 + $0x30] sm:$0xf]
    %v431 = vld [vmem:[%s3 + $0x34] sm:$0xf]
    %v432 = vld [vmem:[%s3 + $0x38] sm:$0xf]
    %v433 = vld [vmem:[%s3 + $0x3c] sm:$0xf]
    %v434 = vld [vmem:[%s4] sm:$0x1]
    %v436 = vlaneseq
    %v437 = vshrl.u32 %v436, 7
    %v438 = vsub.s32 0, %v437
    %v439 = vrot.slane %v434, %v438
    %v457 = vunpack.c.l.b16 %v418
    %v458 = vunpack.c.l.b16 %v419
    %v459 = vunpack.c.l.b16 %v420
    %v460 = vunpack.c.l.b16 %v421
    %v461 = vunpack.c.l.b16 %v422
    %v462 = vunpack.c.l.b16 %v423
    %v463 = vunpack.c.l.b16 %v424
    %v464 = vunpack.c.l.b16 %v425
    %v465 = vunpack.c.l.b16 %v426
    %v466 = vunpack.c.l.b16 %v427
    %v467 = vunpack.c.l.b16 %v428
    %v468 = vunpack.c.l.b16 %v429
    %v469 = vunpack.c.l.b16 %v430
    %v470 = vunpack.c.l.b16 %v431
    %v471 = vunpack.c.l.b16 %v432
    %v472 = vunpack.c.l.b16 %v433
    %v473 = vpack.c.b16 %v458, %v457
    %v474 = vpack.c.b16 %v460, %v459
    %v475 = vpack.c.b16 %v462, %v461
    %v476 = vpack.c.b16 %v464, %v463
    %v477 = vpack.c.b16 %v466, %v465
    %v478 = vpack.c.b16 %v468, %v467
    %v479 = vpack.c.b16 %v470, %v469
    %v480 = vpack.c.b16 %v472, %v471
    %489 = vmatprep.subr.bf16.mxu0 0
    %490 = vmatpush1.bf16.msra.mxu0 %v480
    %491 = vmatprep.subr.bf16.mxu0 0
    %492 = vmatpush1.bf16.msra.mxu0 %v479
    %493 = vmatprep.subr.bf16.mxu0 0
    %494 = vmatpush1.bf16.msra.mxu0 %v478
    %495 = vmatprep.subr.bf16.mxu0 0
    %496 = vmatpush1.bf16.msra.mxu0 %v477
    %497 = vmatprep.subr.bf16.mxu0 0
    %498 = vmatpush1.bf16.msra.mxu0 %v476
    %499 = vmatprep.subr.bf16.mxu0 0
    %500 = vmatpush1.bf16.msra.mxu0 %v475
    %501 = vmatprep.subr.bf16.mxu0 0
    %502 = vmatpush1.bf16.msra.mxu0 %v474
    %503 = vmatprep.subr.bf16.mxu0 0
    %504 = vmatpush1.bf16.msra.mxu0 %v473
    %505 = vmatprep.subr.bf16.mxu0 0
    %506 = vmatpush2.bf16.msra.mxu0 0
    %507 = vmatprep.subr.bf16.mxu0 0
    %508 = vmatpush2.bf16.msra.mxu0 0
    %509 = vmatprep.subr.bf16.mxu0 0
    %510 = vmatpush2.bf16.msra.mxu0 0
    %511 = vmatprep.subr.bf16.mxu0 0
    %512 = vmatpush2.bf16.msra.mxu0 0
    %513 = vmatprep.subr.bf16.mxu0 0
    %514 = vmatpush2.bf16.msra.mxu0 0
    %515 = vmatprep.subr.bf16.mxu0 0
    %516 = vmatpush2.bf16.msra.mxu0 0
    %517 = vmatprep.subr.bf16.mxu0 0
    %518 = vmatpush2.bf16.msra.mxu0 0
    %519 = vmatprep.subr.bf16.mxu0 0
    %520 = vmatpush2.bf16.msra.mxu0 0
    %521 = vmatprep.mubr.bf16.mxu0 0
    %522 = vmatmul.mubr.bf16.gmra.mxu0 %v417
    %v523 = vpop.f32.mrf.mxu0
    %v524 = vadd.f32 %v439, %v523
    %v525 = vpop.f32.mrf.mxu0
    %v526 = vpop.f32.mrf.mxu0
    %v527 = vadd.f32 %v439, %v526
    %v528 = vpop.f32.mrf.mxu0
    %529 = vdwg.mxu0
    %vm530 = vcmask 64512
    %531 = vst.msk [vmem:[#allocation2] sm:$0xff] %vm530, %v524
    %532 = vst.msk [vmem:[#allocation2 + $0x8] sm:$0xff] %vm530, %v527
    // Predicated region
    $region22: #{simple_nn_forward.1} parent=1 // pred_check
      _
    $region23: #{simple_nn_forward.1} parent=1 // pred_check_branch
      %534 = sbr.rel (0) target = $region25
    $region24: #{simple_nn_forward.1} parent=1 // pred_region
      %s536 = ssub.s32 256, 32
      %537 = vsyncadd [#allocation3], %s536
      %s538 = sshll.u32 [#allocation2], 4
      %s539 = int_to_ptr.vmem [resolvable:$true] %s538
      %544 = dma.vmem_to_hbm [thread:$0]  %s539, 32, %s5, [#allocation3], 32, 32, 2
    $region25: #{simple_nn_forward.1} parent=1 // pred_fallthru
      _
    // Predicated region
    $region26: #{simple_nn_forward.1} parent=1 // pred_check
      _
    $region27: #{simple_nn_forward.1} parent=1 // pred_check_branch
      %546 = sbr.rel (0) target = $region29
    $region28: #{simple_nn_forward.1} parent=1 // pred_region
      %547 = dma.done [#allocation3], 256
    $region29: #{simple_nn_forward.1} parent=1 // pred_fallthru
      _
    %548 = vsyncpa [#allocation3], 1

</llo_original>
